<compile_context>
chip_gen: v6e
topology: v6e:2x2x1
jax: 0.10.0
libtpu: 0.0.40
codegen_flags: <defaults>
</compile_context>

<pallas_src>
import functools

import jax
import jax.numpy as jnp
from jax.experimental import pallas as pl
from jax.experimental.pallas import tpu as pltpu


def _round_up(x: int, m: int) -> int:
    return ((x + m - 1) // m) * m


def _cdiv(a: int, b: int) -> int:
    return (a + b - 1) // b


def _vmem_capacity_bytes() -> int:
    try:
        return int(pltpu.get_tpu_info().vmem_capacity_bytes)
    except Exception:
        # Conservative fallback (safe on v7x's 64 MiB per-TensorCore VMEM).
        return 64 * 1024 * 1024


# ---------------------------------------------------------------------------
# Kernels
# ---------------------------------------------------------------------------

def _fc_kernel_fullk(x_ref, w_ref, b_ref, o_ref):
    # x_ref: (bm, K)  w_ref: (K, bn)  b_ref: (1, bn)  o_ref: (bm, bn)
    # One long MXU contraction per output tile; f32 accumulate; bias in f32.
    acc = jnp.dot(x_ref[...], w_ref[...], preferred_element_type=jnp.float32)
    o_ref[...] = (acc + b_ref[...].astype(jnp.float32)).astype(o_ref.dtype)


def _fc_kernel_ksplit(x_ref, w_ref, b_ref, o_ref, acc_ref):
    # x_ref: (bm, bk)  w_ref: (bk, bn)  b_ref: (1, bn)  o_ref: (bm, bn)
    # acc_ref: (bm, bn) f32 accumulator, resident across the K grid axis.
    k = pl.program_id(2)
    part = jnp.dot(x_ref[...], w_ref[...], preferred_element_type=jnp.float32)

    @pl.when(k == 0)
    def _init():
        # Fold the bias in at k==0: no zero-fill store, no extra finalize add.
        acc_ref[...] = part + b_ref[...].astype(jnp.float32)

    @pl.when(k > 0)
    def _accum():
        acc_ref[...] += part

    @pl.when(k == pl.num_programs(2) - 1)
    def _finalize():
        o_ref[...] = acc_ref[...].astype(o_ref.dtype)


# ---------------------------------------------------------------------------
# Wrapper
# ---------------------------------------------------------------------------

@functools.partial(
    jax.jit, static_argnames=("block_m", "block_n", "block_k", "force_k_grid")
)
def fc_forward(x, w_t, b, *, block_m=512, block_n=1024, block_k=512,
               force_k_grid=False):
    """Fully-connected forward: x @ w_t + b.

    x:   [M, K]
    w_t: [K, N]   (PyTorch nn.Linear weight, transposed once in the wrapper)
    b:   [N]
    returns [M, N] in x.dtype (accumulation in float32).
    """
    M, K = x.shape
    K2, N = w_t.shape
    assert K == K2, (K, K2)
    assert b.shape == (N,), b.shape

    x_b = jnp.dtype(x.dtype).itemsize
    w_b = jnp.dtype(w_t.dtype).itemsize
    b_b = jnp.dtype(b.dtype).itemsize
    o_b = x_b  # output is x.dtype

    # Sublane multiple for the activation dtype (8 for f32, 16 for bf16, 32 for i8).
    sub = max(8, 32 // max(x_b, 1))

    block_m = _round_up(max(int(block_m), sub), sub)
    block_n = _round_up(max(int(block_n), 128), 128)
    block_k = _round_up(max(int(block_k), 128), 128)

    # One M tile when the batch fits (weight streamed from HBM exactly once);
    # bm == M (full dim) is always a legal block even if not a sublane multiple.
    bm = block_m if M > block_m else M
    bn = block_n if N > block_n else N

    # v7x has 2 TensorCores: if the whole problem is a single tile, split N into
    # >=2 lane-aligned tiles so both cores get work on the "parallel" axes.
    if _cdiv(M, bm) == 1 and _cdiv(N, bn) == 1 and N >= 256:
        bn = _round_up(_cdiv(N, 2), 128)

    # Generation-aware VMEM limit / tile budget.
    vmem_cap = _vmem_capacity_bytes()
    vmem_limit = max(32 * 1024 * 1024, int(0.75 * vmem_cap))
    tile_budget = min(vmem_limit // 2, 40 * 1024 * 1024)

    b2d = b.reshape(1, N)

    m_tiles = _cdiv(M, bm)
    n_tiles = _cdiv(N, bn)

    # Advisory cost estimate: x is re-read once per N tile, w once per M tile.
    cost = pl.CostEstimate(
        flops=2 * M * N * K,
        transcendentals=0,
        bytes_accessed=(
            n_tiles * M * K * x_b
            + m_tiles * K * N * w_b
            + m_tiles * N * b_b
            + M * N * o_b
        ),
    )

    # Working set of the full-K path (double-buffered inputs/outputs).
    ws_fullk = 2 * (bm * K * x_b + K * bn * w_b + bn * b_b) + 2 * bm * bn * o_b

    if not force_k_grid and ws_fullk <= tile_budget:
        # ------------------------- 2-D grid, full-K panels -------------------
        grid = (m_tiles, n_tiles)
        return pl.pallas_call(
            _fc_kernel_fullk,
            out_shape=jax.ShapeDtypeStruct((M, N), x.dtype),
            grid_spec=pltpu.PrefetchScalarGridSpec(
                num_scalar_prefetch=0,
                grid=grid,
                in_specs=[
                    pl.BlockSpec((bm, K), lambda i, j: (i, 0)),   # x panel
                    pl.BlockSpec((K, bn), lambda i, j: (0, j)),   # weight panel
                    pl.BlockSpec((1, bn), lambda i, j: (0, j)),   # bias tile
                ],
                out_specs=pl.BlockSpec((bm, bn), lambda i, j: (i, j)),
            ),
            compiler_params=pltpu.CompilerParams(
                dimension_semantics=("parallel", "parallel"),
                vmem_limit_bytes=vmem_limit,
            ),
            cost_estimate=cost,
        )(x, w_t, b2d)

    # ----------------------------- 3-D grid, K split -------------------------
    # K must be zero-padded (out-of-bounds reads on the reduction axis would
    # corrupt the dot product); M/N edge blocks are handled by masked stores.
    bk = min(block_k, _round_up(K, 128))
    K_pad = _round_up(K, bk)
    if K_pad != K:
        x = jnp.pad(x, ((0, 0), (0, K_pad - K)))
        w_t = jnp.pad(w_t, ((0, K_pad - K), (0, 0)))
    k_tiles = K_pad // bk
    grid = (m_tiles, n_tiles, k_tiles)

    return pl.pallas_call(
        _fc_kernel_ksplit,
        out_shape=jax.ShapeDtypeStruct((M, N), x.dtype),
        grid_spec=pltpu.PrefetchScalarGridSpec(
            num_scalar_prefetch=0,
            grid=grid,
            in_specs=[
                pl.BlockSpec((bm, bk), lambda i, j, k: (i, k)),   # x tile
                pl.BlockSpec((bk, bn), lambda i, j, k: (k, j)),   # weight tile
                pl.BlockSpec((1, bn), lambda i, j, k: (0, j)),    # bias tile
            ],
            out_specs=pl.BlockSpec((bm, bn), lambda i, j, k: (i, j)),
            scratch_shapes=[pltpu.VMEM((bm, bn), jnp.float32)],
        ),
        compiler_params=pltpu.CompilerParams(
            dimension_semantics=("parallel", "parallel", "arbitrary"),
            vmem_limit_bytes=vmem_limit,
        ),
        cost_estimate=cost,
    )(x, w_t, b2d)


def init_fc_params(key, nn_in, nn_out, dtype=jnp.float32):
    """Deterministic init matching nn.Linear's default: U(-1/sqrt(in), 1/sqrt(in))."""
    k_w, k_b = jax.random.split(key)
    bound = 1.0 / jnp.sqrt(jnp.array(nn_in, dtype=jnp.float32))
    # PyTorch stores weight as [nn_out, nn_in]; keep that convention here.
    weight = jax.random.uniform(
        k_w, (nn_out, nn_in), dtype=dtype, minval=-bound, maxval=bound
    )
    bias = jax.random.uniform(
        k_b, (nn_out,), dtype=dtype, minval=-bound, maxval=bound
    )
    return weight, bias


if __name__ == "__main__":
    key = jax.random.PRNGKey(0)
    keys = jax.random.split(key, 6)

    # --- Test 1: the module's small demo shapes (single full-K tile) ---------
    batch, nn_in, nn_out = 8, 32, 16
    x = jax.random.normal(keys[0], (batch, nn_in), dtype=jnp.float32)
    weight, bias = init_fc_params(keys[1], nn_in, nn_out)   # weight: [nn_out, nn_in]

    out = jax.block_until_ready(fc_forward(x, weight.T, bias))
    ref = x @ weight.T + bias
    assert out.shape == (batch, nn_out), out.shape
    assert jnp.allclose(out, ref, atol=1e-5, rtol=1e-5), float(
        jnp.max(jnp.abs(out - ref))
    )

    # --- Test 2: bf16 streaming, ragged M/N, multi-N-tile (edge blocks) ------
    M2, K2, N2 = 200, 384, 272
    x2 = jax.random.normal(keys[2], (M2, K2), dtype=jnp.float32).astype(jnp.bfloat16)
    w2, b2 = init_fc_params(keys[3], K2, N2)                 # w2: [N2, K2] f32
    w2 = w2.astype(jnp.bfloat16)

    out2 = jax.block_until_ready(fc_forward(x2, w2.T, b2))
    ref2 = x2.astype(jnp.float32) @ w2.T.astype(jnp.float32) + b2
    assert out2.shape == (M2, N2), out2.shape
    assert jnp.allclose(out2.astype(jnp.float32), ref2, atol=0.1, rtol=0.02), float(
        jnp.max(jnp.abs(out2.astype(jnp.float32) - ref2))
    )

    # --- Test 3: forced K-split (3-D grid) path, ragged K (zero-padded) ------
    M3, K3, N3 = 192, 500, 320
    x3 = jax.random.normal(keys[4], (M3, K3), dtype=jnp.float32)
    w3, b3 = init_fc_params(keys[5], K3, N3)
    out3 = jax.block_until_ready(
        fc_forward(x3, w3.T, b3, block_k=128, force_k_grid=True)
    )
    ref3 = x3 @ w3.T + b3
    assert out3.shape == (M3, N3), out3.shape
    assert jnp.allclose(out3, ref3, atol=1e-3, rtol=1e-3), float(
        jnp.max(jnp.abs(out3 - ref3))
    )

    print("KERNEL_OK")
</pallas_src>

<mosaic_0001>
module attributes {stable_mosaic.version = 11 : i64} {
  func.func @_fc_kernel_fullk(%arg0: i32, %arg1: i32, %arg2: memref<8x32xf32, #tpu.memory_space<vmem>>, %arg3: memref<32x16xf32, #tpu.memory_space<vmem>>, %arg4: memref<1x16xf32, #tpu.memory_space<vmem>>, %arg5: memref<8x16xf32, #tpu.memory_space<vmem>>) attributes {dimension_semantics = [#tpu.dimension_semantics<parallel>, #tpu.dimension_semantics<parallel>], iteration_bounds = array<i64: 1, 1>, scalar_prefetch = 0 : i64, scratch_operands = 0 : i64, tpu.core_type = #tpu.core_type<tc>, window_params = [{transform_indices = @transform_0, window_bounds = array<i64: 8, 32>}, {transform_indices = @transform_1, window_bounds = array<i64: 32, 16>}, {transform_indices = @transform_2, window_bounds = array<i64: 1, 16>}, {transform_indices = @transform_3, window_bounds = array<i64: 8, 16>}]} {
    %c0 = arith.constant 0 : index
    %c0_0 = arith.constant 0 : index
    %0 = vector.load %arg2[%c0, %c0_0] : memref<8x32xf32, #tpu.memory_space<vmem>>, vector<8x32xf32>
    %c0_1 = arith.constant 0 : index
    %c0_2 = arith.constant 0 : index
    %1 = vector.load %arg3[%c0_1, %c0_2] : memref<32x16xf32, #tpu.memory_space<vmem>>, vector<32x16xf32>
    %cst = arith.constant dense<0.000000e+00> : vector<8x16xf32>
    %2 = tpu.matmul %0, %1, %cst {dimension_numbers = #tpu.dot_dimension_numbers<[1], [0], [0], [1], [0, 0, 1, 1], [], []>} : vector<8x32xf32>, vector<32x16xf32>, vector<8x16xf32> -> vector<8x16xf32>
    %c0_3 = arith.constant 0 : index
    %c0_4 = arith.constant 0 : index
    %3 = vector.load %arg4[%c0_3, %c0_4] : memref<1x16xf32, #tpu.memory_space<vmem>>, vector<1x16xf32>
    %4 = vector.broadcast %3 : vector<1x16xf32> to vector<8x16xf32>
    %5 = arith.addf %2, %4 : vector<8x16xf32>
    %c0_5 = arith.constant 0 : index
    %c0_6 = arith.constant 0 : index
    %6 = vector.load %arg5[%c0_5, %c0_6] : memref<8x16xf32, #tpu.memory_space<vmem>>, vector<8x16xf32>
    tpu.vector_store %arg5[%c0_5, %c0_6], %5 {strides = array<i32>} : memref<8x16xf32, #tpu.memory_space<vmem>>, vector<8x16xf32>,
    return
  }
  func.func @transform_0(%arg0: i32, %arg1: i32) -> (i32, i32) {
    %c0_i32 = arith.constant 0 : i32
    %c0_i32_0 = arith.constant 0 : i32
    return %arg0, %c0_i32 : i32, i32
  }
  func.func @transform_1(%arg0: i32, %arg1: i32) -> (i32, i32) {
    %c0_i32 = arith.constant 0 : i32
    %c0_i32_0 = arith.constant 0 : i32
    return %c0_i32, %arg1 : i32, i32
  }
  func.func @transform_2(%arg0: i32, %arg1: i32) -> (i32, i32) {
    %c0_i32 = arith.constant 0 : i32
    %c0_i32_0 = arith.constant 0 : i32
    return %c0_i32, %arg1 : i32, i32
  }
  func.func @transform_3(%arg0: i32, %arg1: i32) -> (i32, i32) {
    %c0_i32 = arith.constant 0 : i32
    return %arg0, %arg1 : i32, i32
  }
}

</mosaic_0001>

<llo_original>
// kernel: fc_forward.1
$region0: #{fc_forward.1}
  #allocation0 [shape = 'u32[]', space=smem, size = 0x4, offset = 0x4, fixed_abs, tag = 'smem constant byte address 0x4 - core index']
  #allocation1 [shape = 'u32[144,128]{1,0:T(1,128)}', space=vmem, size = 0x12000, scoped, tag = 'internal scratch']
  %s0 = inlined_call_operand.vmem [shape: f32[8,32], index: 0, kind: input, shape index: {}]
  %s1 = inlined_call_operand.vmem [shape: f32[32,16], index: 1, kind: input, shape index: {}]
  %s2 = inlined_call_operand.vmem [shape: f32[1,16], index: 2, kind: input, shape index: {}]
  %s3 = inlined_call_operand.hbm [shape: f32[8,16], index: 3, kind: output, shape index: {}]
  %s4 = sld [smem:[#allocation0]]
  $region22: #{fc_forward.1} parent=0
    _
  %s6 = ssub.s32 1, %s4
  %s7 = scalar_select 0, %s6, %s4
  $region1: #{fc_forward.1} parent=0
    #allocation2 [shape = 'u8[4096]{0}', space=vmem, size = 0x1000, scoped, tag = 'output window, operand 0, single buffered']
    #allocation3 [shape = 's32[1]{0}', space=sflag, size = 0x4, scoped, tag = 'scoped memory for fc_forward.1']
    %8 = vsyncpa [#allocation3], 0
    // Predicated region
    $region2: #{fc_forward.1} parent=1 // pred_check
      _
    $region3: #{fc_forward.1} parent=1 // pred_check_branch
      %10 = sbr.rel (0) target = $region5
    $region4: #{fc_forward.1} parent=1 // pred_region
      _
    $region5: #{fc_forward.1} parent=1 // pred_fallthru
      _
    // Predicated region
    $region6: #{fc_forward.1} parent=1 // pred_check
      _
    $region7: #{fc_forward.1} parent=1 // pred_check_branch
      %12 = sbr.rel (0) target = $region9
    $region8: #{fc_forward.1} parent=1 // pred_region
      _
    $region9: #{fc_forward.1} parent=1 // pred_fallthru
      _
    // Predicated region
    $region10: #{fc_forward.1} parent=1 // pred_check
      _
    $region11: #{fc_forward.1} parent=1 // pred_check_branch
      %14 = sbr.rel (0) target = $region13
    $region12: #{fc_forward.1} parent=1 // pred_region
      _
    $region13: #{fc_forward.1} parent=1 // pred_fallthru
      _
    %v15 = vld [vmem:[%s0] sm:$0xff]
    %v16 = vld [vmem:[%s1] sm:$0xff]
    %v17 = vld [vmem:[%s1 + $0x8] sm:$0xff]
    %v18 = vld [vmem:[%s1 + $0x10] sm:$0xff]
    %v19 = vld [vmem:[%s1 + $0x18] sm:$0xff]
    %v20 = vld [vmem:[%s2] sm:$0x1]
    %v22 = vlaneseq
    %v23 = vshrl.u32 %v22, 7
    %v24 = vsub.s32 0, %v23
    %v25 = vrot.slane %v20, %v24
    %vm27 = vcmask 261120
    %v29 = vsel %vm27, %v15, 0
    %31 = vmatprep.subr.mxu0 0.0
    %32 = vmatpush1.msra.mxu0 0.0
    %33 = vmatprep.subr.mxu0 0.0
    %34 = vmatpush1.msra.mxu0 0.0
    %35 = vmatprep.subr.mxu0 0.0
    %36 = vmatpush1.msra.mxu0 0.0
    %37 = vmatprep.subr.mxu0 0.0
    %38 = vmatpush1.msra.mxu0 0.0
    %39 = vmatprep.subr.mxu0 0.0
    %40 = vmatpush1.msra.mxu0 0.0
    %41 = vmatprep.subr.mxu0 0.0
    %42 = vmatpush1.msra.mxu0 0.0
    %43 = vmatprep.subr.mxu0 0.0
    %44 = vmatpush1.msra.mxu0 0.0
    %45 = vmatprep.subr.mxu0 0.0
    %46 = vmatpush1.msra.mxu0 0.0
    %47 = vmatprep.subr.mxu0 0.0
    %48 = vmatpush1.msra.mxu0 0.0
    %49 = vmatprep.subr.mxu0 0.0
    %50 = vmatpush1.msra.mxu0 0.0
    %51 = vmatprep.subr.mxu0 0.0
    %52 = vmatpush1.msra.mxu0 0.0
    %53 = vmatprep.subr.mxu0 0.0
    %54 = vmatpush1.msra.mxu0 0.0
    %55 = vmatprep.subr.mxu0 0.0
    %56 = vmatpush1.msra.mxu0 %v19
    %57 = vmatprep.subr.mxu0 0.0
    %58 = vmatpush1.msra.mxu0 %v18
    %59 = vmatprep.subr.mxu0 0.0
    %60 = vmatpush1.msra.mxu0 %v17
    %61 = vmatprep.subr.mxu0 0.0
    %62 = vmatpush1.msra.mxu0 %v16
    %63 = vmatprep.subr.mxu0 0.0
    %64 = vmatpush2.msra.mxu0 0.0
    %65 = vmatprep.subr.mxu0 0.0
    %66 = vmatpush2.msra.mxu0 0.0
    %67 = vmatprep.subr.mxu0 0.0
    %68 = vmatpush2.msra.mxu0 0.0
    %69 = vmatprep.subr.mxu0 0.0
    %70 = vmatpush2.msra.mxu0 0.0
    %71 = vmatprep.subr.mxu0 0.0
    %72 = vmatpush2.msra.mxu0 0.0
    %73 = vmatprep.subr.mxu0 0.0
    %74 = vmatpush2.msra.mxu0 0.0
    %75 = vmatprep.subr.mxu0 0.0
    %76 = vmatpush2.msra.mxu0 0.0
    %77 = vmatprep.subr.mxu0 0.0
    %78 = vmatpush2.msra.mxu0 0.0
    %79 = vmatprep.subr.mxu0 0.0
    %80 = vmatpush2.msra.mxu0 0.0
    %81 = vmatprep.subr.mxu0 0.0
    %82 = vmatpush2.msra.mxu0 0.0
    %83 = vmatprep.subr.mxu0 0.0
    %84 = vmatpush2.msra.mxu0 0.0
    %85 = vmatprep.subr.mxu0 0.0
    %86 = vmatpush2.msra.mxu0 0.0
    %87 = vmatprep.subr.mxu0 0.0
    %88 = vmatpush2.msra.mxu0 0.0
    %89 = vmatprep.subr.mxu0 0.0
    %90 = vmatpush2.msra.mxu0 0.0
    %91 = vmatprep.subr.mxu0 0.0
    %92 = vmatpush2.msra.mxu0 0.0
    %93 = vmatprep.subr.mxu0 0.0
    %94 = vmatpush2.msra.mxu0 0.0
    %95 = vmatprep.mubr.f32.mxu0 0.0
    %96 = vmatmul.mubr.f32.gmra.mxu0 %v29
    %v97 = vpop.f32.mrf.mxu0
    %v98 = vadd.f32 %v25, %v97
    %v99 = vpop.f32.mrf.mxu0
    %100 = vdwg.mxu0
    %vm101 = vcmask 130048
    %102 = vst.msk [vmem:[#allocation2] sm:$0xff] %vm101, %v98
    // Predicated region
    $region14: #{fc_forward.1} parent=1 // pred_check
      _
    $region15: #{fc_forward.1} parent=1 // pred_check_branch
      %104 = sbr.rel (0) target = $region17
    $region16: #{fc_forward.1} parent=1 // pred_region
      %s106 = ssub.s32 128, 128
      %107 = vsyncadd [#allocation3], %s106
      %s109 = sshll.u32 [#allocation2], 4
      %s110 = int_to_ptr.vmem [resolvable:$true] %s109
      %112 = dma.vmem_to_hbm [thread:$0]  %s110, 128, %s3, [#allocation3]
    $region17: #{fc_forward.1} parent=1 // pred_fallthru
      _
    // Predicated region
    $region18: #{fc_forward.1} parent=1 // pred_check
      _
    $region19: #{fc_forward.1} parent=1 // pred_check_branch
      %114 = sbr.rel (0) target = $region21
    $region20: #{fc_forward.1} parent=1 // pred_region
      %115 = dma.done [#allocation3], 128
    $region21: #{fc_forward.1} parent=1 // pred_fallthru
      _
    %116 = vsyncpa [#allocation3], 1

</llo_original>
